<compile_context>
chip_gen: v7x
topology: tpu7x:2x2x1
jax: 0.10.0
libtpu: 0.0.40
codegen_flags: <defaults>
</compile_context>

<pallas_src>
import jax
import jax.numpy as jnp
import numpy as np
from jax import lax
from jax.experimental import pallas as pl
from jax.experimental.pallas import tpu as pltpu

NUM_CLASSES = 2
RECALL_LO, RECALL_HI = 0.95, 1.0
MAX_PAUC = RECALL_HI - RECALL_LO
LAMBDA_PAUC = 0.5
LABEL_SMOOTHING = 0.1

_RHS_LANES = 128  # pad stacked matmul RHS bundles to a full lane width


def _ce_pauc_kernel(preds_ref, tgt_ref, w_ref, out_ref):
    B, C = preds_ref.shape
    preds = preds_ref[...].astype(jnp.float32)            # [B, C]
    tgt = tgt_ref[...]                                     # [B, 1] int32
    w = w_ref[...].astype(jnp.float32)                     # [1, C]

    # ---- label-smoothed one-hot built in-kernel from raw integer targets ----
    cls_iota = lax.broadcasted_iota(jnp.int32, (B, C), 1)
    oh_hard = (tgt == cls_iota).astype(jnp.float32)        # [B, C]
    oh = (1.0 - LABEL_SMOOTHING) * oh_hard + LABEL_SMOOTHING / C

    # ---- softmax / log_softmax over the class axis (exact divide: score ties
    #      must match the reference bit-for-bit for the stable rank tie-break) ----
    m = jnp.max(preds, axis=1, keepdims=True)
    z = preds - m
    ez = jnp.exp(z)
    se = jnp.sum(ez, axis=1, keepdims=True)
    log_probs = z - jnp.log(se)
    probs = ez / se

    # ---- weighted, label-smoothed cross entropy (mean over batch) ----
    ce_rows = -jnp.sum(oh * log_probs * w, axis=1, keepdims=True)   # [B, 1]
    ce = jnp.sum(ce_rows, axis=0, keepdims=True) * (1.0 / B)        # [1, 1]

    # ---- binary pAUC on class 1 (sort-free ROC, O(B^2) work on the MXU) ----
    scores = probs[:, 1:2]                                          # [B, 1]
    y = (tgt == 1).astype(jnp.float32)                              # [B, 1] hard labels

    # Consolidated iotas (no CSE of broadcast_in_dim in Mosaic -> make each once).
    row_i = lax.broadcasted_iota(jnp.int32, (B, B), 0)
    col_j = lax.broadcasted_iota(jnp.int32, (B, B), 1)
    lane = lax.broadcasted_iota(jnp.int32, (B, _RHS_LANES), 1)
    k_iota = lax.broadcasted_iota(jnp.int32, (B, 1), 0)

    # The single remaining "transpose": scores as a [1, B] row via identity-mask
    # select + sublane reduce.
    scores_row = jnp.sum(jnp.where(row_i == col_j, scores, 0.0),
                         axis=0, keepdims=True)                      # [1, B]

    # Comparison matrices, computed once and shared.
    geq = scores_row >= scores          # [B, B]: score_j >= score_i (threshold i)
    eq = scores_row == scores           # tie-break only

    # --- tp/fp per threshold: one bf16 indicator matmul (exact 0/1 values) ---
    rhs_y = jnp.where(lane == 0, y, jnp.where(lane == 1, 1.0 - y, 0.0))   # [B, 128]
    tpfp = jnp.dot(geq.astype(jnp.bfloat16),
                   rhs_y.astype(jnp.bfloat16),
                   preferred_element_type=jnp.float32)                    # [B, 128]
    tp = tpfp[:, 0:1]                                                     # [B, 1]
    fp = tpfp[:, 1:2]                                                     # [B, 1]

    pos = jnp.sum(y, axis=0, keepdims=True)                               # [1, 1]
    neg = float(B) - pos
    # Exact scalar reciprocals once, then cheap VPU multiplies.
    inv_pos = jnp.where(pos > 0, 1.0 / jnp.maximum(pos, 1.0), 0.0)        # [1, 1]
    inv_neg = jnp.where(neg > 0, 1.0 / jnp.maximum(neg, 1.0), 0.0)        # [1, 1]
    tpr = tp * inv_pos                                                    # [B, 1]
    fpr = fp * inv_neg                                                    # [B, 1]

    # --- rank of every sample in descending-score order (stable tie-break by
    #     index): sublane reduce of the transposed ordering matrix. ---
    before = jnp.logical_or(jnp.logical_not(geq),              # score_i > score_j
                            jnp.logical_and(eq, row_i < col_j))
    rank_row = jnp.sum(before.astype(jnp.float32), axis=0, keepdims=True)  # [1, B]

    r_iota = row_i.astype(jnp.float32)                          # reuse row_i as f32 iota
    perm_cur = (r_iota == rank_row).astype(jnp.float32)         # selects sorted pos r

    tprp = jnp.maximum(tpr - RECALL_LO, 0.0)
    maskf = jnp.logical_and(tpr >= RECALL_LO, tpr <= RECALL_HI).astype(jnp.float32)

    # --- gather fpr / clamp(tpr - lo) / recall-mask into sorted order: ONE f32
    #     permutation matmul against one stacked, lane-padded RHS (keep RHS f32 -
    #     exactness of the gather depends on it).  The "next sorted position" values
    #     come from a sublane rotate instead of a second matmul. ---
    rhs_roc = jnp.where(lane == 0, fpr,
                        jnp.where(lane == 1, tprp,
                                  jnp.where(lane == 2, maskf, 0.0)))       # [B, 128]
    cur = jnp.dot(perm_cur, rhs_roc, preferred_element_type=jnp.float32)   # [B, 128]
    # nxt[r] = cur[r+1]; the wrapped last row (r = B-1 -> cur[0]) is zeroed by `valid`.
    nxt = pltpu.roll(cur, shift=B - 1, axis=0)                             # [B, 128]

    fpr_s, tprp_s, mask_s = cur[:, 0:1], cur[:, 1:2], cur[:, 2:3]
    fpr_n, tprp_n, mask_n = nxt[:, 0:1], nxt[:, 1:2], nxt[:, 2:3]

    valid = (k_iota < (B - 1)).astype(jnp.float32)

    # tpr is monotone along the sorted order, so the recall mask is contiguous;
    # trapz over the masked subset == sum over adjacent sorted pairs both in mask.
    contrib = 0.5 * (fpr_n - fpr_s) * (tprp_s + tprp_n) * mask_s * mask_n * valid
    pauc = jnp.sum(contrib, axis=0, keepdims=True)                         # [1, 1]

    w1 = w[0:1, 1:2]                                                       # class-1 weight
    wsum = jnp.sum(w, axis=1, keepdims=True)                               # [1, 1]
    avg_p_auc = (pauc * w1) / (wsum * MAX_PAUC)
    avg_p_auc = jnp.clip(avg_p_auc, 0.0, 1.0)
    pauc_loss = 1.0 - avg_p_auc * avg_p_auc

    out_ref[...] = (1.0 - LAMBDA_PAUC) * ce + LAMBDA_PAUC * pauc_loss


def cross_entropy_pauc_loss(predictions, targets, weight=None):
    """predictions: [B, C] logits, targets: [B] int labels -> scalar loss."""
    B, C = predictions.shape
    if weight is None:
        weight = jnp.ones((C,), jnp.float32)
    w2d = jnp.asarray(weight, jnp.float32).reshape(1, C)
    tgt2d = jnp.asarray(targets, jnp.int32).reshape(B, 1)

    out = pl.pallas_call(
        _ce_pauc_kernel,
        out_shape=jax.ShapeDtypeStruct((1, 1), jnp.float32),
        grid_spec=pl.GridSpec(
            grid=(1,),
            in_specs=[
                pl.BlockSpec((B, C), lambda i: (0, 0)),
                pl.BlockSpec((B, 1), lambda i: (0, 0)),
                pl.BlockSpec((1, C), lambda i: (0, 0)),
            ],
            out_specs=pl.BlockSpec((1, 1), lambda i: (0, 0)),
        ),
        compiler_params=pltpu.CompilerParams(
            dimension_semantics=("arbitrary",)),
    )(predictions, tgt2d, w2d)
    return out[0, 0]


def _reference_loss(preds, targets):
    """Pure-numpy mirror of the PyTorch forward (num_classes=2 binary branch)."""
    preds = np.asarray(preds, np.float64)
    targets = np.asarray(targets)
    B, C = preds.shape
    w = np.ones(C, np.float64)
    oh = np.eye(C)[targets]
    oh = (1.0 - LABEL_SMOOTHING) * oh + LABEL_SMOOTHING / C
    z = preds - preds.max(axis=1, keepdims=True)
    log_probs = z - np.log(np.exp(z).sum(axis=1, keepdims=True))
    probs = np.exp(log_probs)

    scores = probs[:, 1]
    y = (oh[:, 1] > 0.5).astype(np.float64)
    order = np.argsort(-scores, kind="stable")
    sorted_scores = scores[order]
    P = y.sum()
    N = B - P
    tpr = np.zeros(B)
    fpr = np.zeros(B)
    for i in range(B):
        thr = sorted_scores[i]
        pred = scores >= thr
        tp = np.sum(pred & (y == 1))
        fp = np.sum(pred & (y == 0))
        tpr[i] = tp / P if P > 0 else 0.0
        fpr[i] = fp / N if N > 0 else 0.0
    mask = (tpr >= RECALL_LO) & (tpr <= RECALL_HI)
    if mask.sum() > 0:
        yv = np.clip(tpr[mask] - RECALL_LO, 0.0, None)
        xv = fpr[mask]
        pauc = np.sum(0.5 * (yv[1:] + yv[:-1]) * (xv[1:] - xv[:-1])) if xv.size > 1 else 0.0
        pauc = pauc * w[1]
    else:
        pauc = 0.0
    avg = np.clip(pauc / (w.sum() * MAX_PAUC), 0.0, 1.0)
    ce = -(oh * log_probs * w).sum(axis=1).mean()
    return (1.0 - LAMBDA_PAUC) * ce + LAMBDA_PAUC * (1.0 - avg ** 2)


if __name__ == "__main__":
    key = jax.random.PRNGKey(0)
    B, C = 8, NUM_CLASSES
    predictions = jax.random.normal(key, (B, C), dtype=jnp.float32)
    targets = jnp.array([0, 1, 0, 1, 1, 0, 1, 0], dtype=jnp.int32)

    loss = cross_entropy_pauc_loss(predictions, targets)
    loss = jax.block_until_ready(loss)

    ref = _reference_loss(np.asarray(predictions), np.asarray(targets))
    np.testing.assert_allclose(float(loss), float(ref), rtol=5e-4, atol=1e-5)
    print("KERNEL_OK")
</pallas_src>

<mosaic_0001>
module attributes {stable_mosaic.version = 11 : i64} {
  func.func @_ce_pauc_kernel(%arg0: i32, %arg1: memref<8x2xf32, #tpu.memory_space<vmem>>, %arg2: memref<8x1xi32, #tpu.memory_space<vmem>>, %arg3: memref<1x2xf32, #tpu.memory_space<vmem>>, %arg4: memref<1x1xf32, #tpu.memory_space<vmem>>) attributes {dimension_semantics = [#tpu.dimension_semantics<arbitrary>], iteration_bounds = array<i64: 1>, scalar_prefetch = 0 : i64, scratch_operands = 0 : i64, tpu.core_type = #tpu.core_type<tc>, window_params = [{pipeline_mode = #tpu.pipeline_mode<synchronous>, transform_indices = @transform_0, window_bounds = array<i64: 8, 2>}, {pipeline_mode = #tpu.pipeline_mode<synchronous>, transform_indices = @transform_1, window_bounds = array<i64: 8, 1>}, {pipeline_mode = #tpu.pipeline_mode<synchronous>, transform_indices = @transform_2, window_bounds = array<i64: 1, 2>}, {pipeline_mode = #tpu.pipeline_mode<synchronous>, transform_indices = @transform_3, window_bounds = array<i64: 1, 1>}]} {
    %c0 = arith.constant 0 : index
    %c0_0 = arith.constant 0 : index
    %0 = vector.load %arg1[%c0, %c0_0] : memref<8x2xf32, #tpu.memory_space<vmem>>, vector<8x2xf32>
    %c0_1 = arith.constant 0 : index
    %c0_2 = arith.constant 0 : index
    %1 = vector.load %arg2[%c0_1, %c0_2] : memref<8x1xi32, #tpu.memory_space<vmem>>, vector<8x1xi32>
    %c0_3 = arith.constant 0 : index
    %c0_4 = arith.constant 0 : index
    %2 = vector.load %arg3[%c0_3, %c0_4] : memref<1x2xf32, #tpu.memory_space<vmem>>, vector<1x2xf32>
    %3 = tpu.iota {dimensions = array<i32: 1>} : vector<8x2xi32>
    %4 = vector.broadcast %1 : vector<8x1xi32> to vector<8x2xi32>
    %5 = arith.cmpi eq, %4, %3 : vector<8x2xi32>
    %6 = arith.extui %5 : vector<8x2xi1> to vector<8x2xi32>
    %7 = arith.sitofp %6 : vector<8x2xi32> to vector<8x2xf32>
    %cst = arith.constant 0.899999976 : f32
    %8 = vector.broadcast %cst : f32 to vector<8x2xf32>
    %9 = arith.mulf %8, %7 : vector<8x2xf32>
    %cst_5 = arith.constant 5.000000e-02 : f32
    %10 = vector.broadcast %cst_5 : f32 to vector<8x2xf32>
    %11 = arith.addf %9, %10 : vector<8x2xf32>
    %cst_6 = arith.constant dense<0xFF800000> : vector<8xf32>
    %12 = vector.multi_reduction <maximumf>, %0, %cst_6 [1] : vector<8x2xf32> to vector<8xf32>
    %13 = vector.shape_cast %12 : vector<8xf32> to vector<8x1xf32>
    %14 = vector.broadcast %13 : vector<8x1xf32> to vector<8x2xf32>
    %15 = arith.subf %0, %14 : vector<8x2xf32>
    %16 = math.exp %15 : vector<8x2xf32>
    %cst_7 = arith.constant dense<0.000000e+00> : vector<8xf32>
    %17 = vector.multi_reduction <add>, %16, %cst_7 [1] : vector<8x2xf32> to vector<8xf32>
    %18 = vector.shape_cast %17 : vector<8xf32> to vector<8x1xf32>
    %19 = math.log %18 : vector<8x1xf32>
    %20 = vector.broadcast %19 : vector<8x1xf32> to vector<8x2xf32>
    %21 = arith.subf %15, %20 : vector<8x2xf32>
    %22 = vector.broadcast %18 : vector<8x1xf32> to vector<8x2xf32>
    %23 = arith.divf %16, %22 : vector<8x2xf32>
    %24 = arith.mulf %11, %21 : vector<8x2xf32>
    %25 = vector.broadcast %2 : vector<1x2xf32> to vector<8x2xf32>
    %26 = arith.mulf %24, %25 : vector<8x2xf32>
    %cst_8 = arith.constant dense<0.000000e+00> : vector<8xf32>
    %27 = vector.multi_reduction <add>, %26, %cst_8 [1] : vector<8x2xf32> to vector<8xf32>
    %28 = vector.shape_cast %27 : vector<8xf32> to vector<8x1xf32>
    %cst_9 = arith.constant 0.000000e+00 : f32
    %29 = vector.broadcast %cst_9 : f32 to vector<8x1xf32>
    %30 = arith.subf %29, %28 : vector<8x1xf32>
    %cst_10 = arith.constant dense<0.000000e+00> : vector<1xf32>
    %31 = vector.multi_reduction <add>, %30, %cst_10 [0] : vector<8x1xf32> to vector<1xf32>
    %32 = vector.shape_cast %31 : vector<1xf32> to vector<1x1xf32>
    %cst_11 = arith.constant 1.250000e-01 : f32
    %33 = vector.broadcast %cst_11 : f32 to vector<1x1xf32>
    %34 = arith.mulf %32, %33 : vector<1x1xf32>
    %35 = vector.extract_strided_slice %23 {offsets = [0, 1], sizes = [8, 1], strides = [1, 1]} : vector<8x2xf32> to vector<8x1xf32>
    %c1_i32 = arith.constant 1 : i32
    %36 = vector.broadcast %c1_i32 : i32 to vector<8x1xi32>
    %37 = arith.cmpi eq, %1, %36 : vector<8x1xi32>
    %38 = arith.extui %37 : vector<8x1xi1> to vector<8x1xi32>
    %39 = arith.sitofp %38 : vector<8x1xi32> to vector<8x1xf32>
    %40 = tpu.iota {dimensions = array<i32: 0>} : vector<8x8xi32>
    %41 = tpu.iota {dimensions = array<i32: 1>} : vector<8x8xi32>
    %42 = tpu.iota {dimensions = array<i32: 1>} : vector<8x128xi32>
    %43 = tpu.iota {dimensions = array<i32: 0>} : vector<8x1xi32>
    %44 = arith.cmpi eq, %40, %41 : vector<8x8xi32>
    %cst_12 = arith.constant 0.000000e+00 : f32
    %45 = vector.shape_cast %35 : vector<8x1xf32> to vector<8x1xf32>
    %46 = vector.broadcast %45 : vector<8x1xf32> to vector<8x8xf32>
    %47 = vector.broadcast %cst_12 : f32 to vector<8x8xf32>
    %48 = arith.select %44, %46, %47 : vector<8x8xi1>, vector<8x8xf32>
    %cst_13 = arith.constant dense<0.000000e+00> : vector<8xf32>
    %49 = vector.multi_reduction <add>, %48, %cst_13 [0] : vector<8x8xf32> to vector<8xf32>
    %50 = vector.shape_cast %49 : vector<8xf32> to vector<1x8xf32>
    %51 = vector.broadcast %50 : vector<1x8xf32> to vector<8x8xf32>
    %52 = vector.broadcast %35 : vector<8x1xf32> to vector<8x8xf32>
    %53 = arith.cmpf oge, %51, %52 : vector<8x8xf32>
    %54 = vector.broadcast %50 : vector<1x8xf32> to vector<8x8xf32>
    %55 = vector.broadcast %35 : vector<8x1xf32> to vector<8x8xf32>
    %56 = arith.cmpf oeq, %54, %55 : vector<8x8xf32>
    %c0_i32 = arith.constant 0 : i32
    %57 = vector.broadcast %c0_i32 : i32 to vector<8x128xi32>
    %58 = arith.cmpi eq, %42, %57 : vector<8x128xi32>
    %c1_i32_14 = arith.constant 1 : i32
    %59 = vector.broadcast %c1_i32_14 : i32 to vector<8x128xi32>
    %60 = arith.cmpi eq, %42, %59 : vector<8x128xi32>
    %cst_15 = arith.constant 1.000000e+00 : f32
    %61 = vector.broadcast %cst_15 : f32 to vector<8x1xf32>
    %62 = arith.subf %61, %39 : vector<8x1xf32>
    %cst_16 = arith.constant 0.000000e+00 : f32
    %63 = vector.shape_cast %62 : vector<8x1xf32> to vector<8x1xf32>
    %64 = vector.broadcast %63 : vector<8x1xf32> to vector<8x128xf32>
    %65 = vector.broadcast %cst_16 : f32 to vector<8x128xf32>
    %66 = arith.select %60, %64, %65 : vector<8x128xi1>, vector<8x128xf32>
    %67 = vector.shape_cast %39 : vector<8x1xf32> to vector<8x1xf32>
    %68 = vector.broadcast %67 : vector<8x1xf32> to vector<8x128xf32>
    %69 = arith.select %58, %68, %66 : vector<8x128xi1>, vector<8x128xf32>
    %70 = arith.extui %53 : vector<8x8xi1> to vector<8x8xi32>
    %71 = arith.sitofp %70 : vector<8x8xi32> to vector<8x8xf32>
    %72 = arith.truncf %71 : vector<8x8xf32> to vector<8x8xbf16>
    %73 = arith.truncf %69 : vector<8x128xf32> to vector<8x128xbf16>
    %cst_17 = arith.constant dense<0.000000e+00> : vector<8x128xf32>
    %74 = tpu.matmul %72, %73, %cst_17 {dimension_numbers = #tpu.dot_dimension_numbers<[1], [0], [0], [1], [0, 0, 1, 1], [], []>} : vector<8x8xbf16>, vector<8x128xbf16>, vector<8x128xf32> -> vector<8x128xf32>
    %75 = vector.extract_strided_slice %74 {offsets = [0, 0], sizes = [8, 1], strides = [1, 1]} : vector<8x128xf32> to vector<8x1xf32>
    %76 = vector.extract_strided_slice %74 {offsets = [0, 1], sizes = [8, 1], strides = [1, 1]} : vector<8x128xf32> to vector<8x1xf32>
    %cst_18 = arith.constant dense<0.000000e+00> : vector<1xf32>
    %77 = vector.multi_reduction <add>, %39, %cst_18 [0] : vector<8x1xf32> to vector<1xf32>
    %78 = vector.shape_cast %77 : vector<1xf32> to vector<1x1xf32>
    %cst_19 = arith.constant 8.000000e+00 : f32
    %79 = vector.broadcast %cst_19 : f32 to vector<1x1xf32>
    %80 = arith.subf %79, %78 : vector<1x1xf32>
    %cst_20 = arith.constant 0.000000e+00 : f32
    %81 = vector.broadcast %cst_20 : f32 to vector<1x1xf32>
    %82 = arith.cmpf ogt, %78, %81 : vector<1x1xf32>
    %cst_21 = arith.constant 1.000000e+00 : f32
    %83 = vector.broadcast %cst_21 : f32 to vector<1x1xf32>
    %84 = arith.maximumf %78, %83 : vector<1x1xf32>
    %cst_22 = arith.constant 1.000000e+00 : f32
    %85 = vector.broadcast %cst_22 : f32 to vector<1x1xf32>
    %86 = arith.divf %85, %84 : vector<1x1xf32>
    %cst_23 = arith.constant 0.000000e+00 : f32
    %87 = vector.broadcast %cst_23 : f32 to vector<1x1xf32>
    %88 = arith.select %82, %86, %87 : vector<1x1xi1>, vector<1x1xf32>
    %cst_24 = arith.constant 0.000000e+00 : f32
    %89 = vector.broadcast %cst_24 : f32 to vector<1x1xf32>
    %90 = arith.cmpf ogt, %80, %89 : vector<1x1xf32>
    %cst_25 = arith.constant 1.000000e+00 : f32
    %91 = vector.broadcast %cst_25 : f32 to vector<1x1xf32>
    %92 = arith.maximumf %80, %91 : vector<1x1xf32>
    %cst_26 = arith.constant 1.000000e+00 : f32
    %93 = vector.broadcast %cst_26 : f32 to vector<1x1xf32>
    %94 = arith.divf %93, %92 : vector<1x1xf32>
    %cst_27 = arith.constant 0.000000e+00 : f32
    %95 = vector.broadcast %cst_27 : f32 to vector<1x1xf32>
    %96 = arith.select %90, %94, %95 : vector<1x1xi1>, vector<1x1xf32>
    %97 = vector.broadcast %88 : vector<1x1xf32> to vector<8x1xf32>
    %98 = arith.mulf %75, %97 : vector<8x1xf32>
    %99 = vector.broadcast %96 : vector<1x1xf32> to vector<8x1xf32>
    %100 = arith.mulf %76, %99 : vector<8x1xf32>
    %cst_28 = arith.constant dense<true> : vector<8x8xi1>
    %101 = arith.xori %53, %cst_28 : vector<8x8xi1>
    %102 = arith.cmpi slt, %40, %41 : vector<8x8xi32>
    %103 = arith.andi %56, %102 : vector<8x8xi1>
    %104 = arith.ori %101, %103 : vector<8x8xi1>
    %105 = arith.extui %104 : vector<8x8xi1> to vector<8x8xi32>
    %106 = arith.sitofp %105 : vector<8x8xi32> to vector<8x8xf32>
    %cst_29 = arith.constant dense<0.000000e+00> : vector<8xf32>
    %107 = vector.multi_reduction <add>, %106, %cst_29 [0] : vector<8x8xf32> to vector<8xf32>
    %108 = vector.shape_cast %107 : vector<8xf32> to vector<1x8xf32>
    %109 = arith.sitofp %40 : vector<8x8xi32> to vector<8x8xf32>
    %110 = vector.broadcast %108 : vector<1x8xf32> to vector<8x8xf32>
    %111 = arith.cmpf oeq, %109, %110 : vector<8x8xf32>
    %112 = arith.extui %111 : vector<8x8xi1> to vector<8x8xi32>
    %113 = arith.sitofp %112 : vector<8x8xi32> to vector<8x8xf32>
    %cst_30 = arith.constant 0.949999988 : f32
    %114 = vector.broadcast %cst_30 : f32 to vector<8x1xf32>
    %115 = arith.subf %98, %114 : vector<8x1xf32>
    %cst_31 = arith.constant 0.000000e+00 : f32
    %116 = vector.broadcast %cst_31 : f32 to vector<8x1xf32>
    %117 = arith.maximumf %115, %116 : vector<8x1xf32>
    %cst_32 = arith.constant 0.949999988 : f32
    %118 = vector.broadcast %cst_32 : f32 to vector<8x1xf32>
    %119 = arith.cmpf oge, %98, %118 : vector<8x1xf32>
    %cst_33 = arith.constant 1.000000e+00 : f32
    %120 = vector.broadcast %cst_33 : f32 to vector<8x1xf32>
    %121 = arith.cmpf ole, %98, %120 : vector<8x1xf32>
    %122 = arith.andi %119, %121 : vector<8x1xi1>
    %123 = arith.extui %122 : vector<8x1xi1> to vector<8x1xi32>
    %124 = arith.sitofp %123 : vector<8x1xi32> to vector<8x1xf32>
    %c0_i32_34 = arith.constant 0 : i32
    %125 = vector.broadcast %c0_i32_34 : i32 to vector<8x128xi32>
    %126 = arith.cmpi eq, %42, %125 : vector<8x128xi32>
    %c1_i32_35 = arith.constant 1 : i32
    %127 = vector.broadcast %c1_i32_35 : i32 to vector<8x128xi32>
    %128 = arith.cmpi eq, %42, %127 : vector<8x128xi32>
    %c2_i32 = arith.constant 2 : i32
    %129 = vector.broadcast %c2_i32 : i32 to vector<8x128xi32>
    %130 = arith.cmpi eq, %42, %129 : vector<8x128xi32>
    %cst_36 = arith.constant 0.000000e+00 : f32
    %131 = vector.shape_cast %124 : vector<8x1xf32> to vector<8x1xf32>
    %132 = vector.broadcast %131 : vector<8x1xf32> to vector<8x128xf32>
    %133 = vector.broadcast %cst_36 : f32 to vector<8x128xf32>
    %134 = arith.select %130, %132, %133 : vector<8x128xi1>, vector<8x128xf32>
    %135 = vector.shape_cast %117 : vector<8x1xf32> to vector<8x1xf32>
    %136 = vector.broadcast %135 : vector<8x1xf32> to vector<8x128xf32>
    %137 = arith.select %128, %136, %134 : vector<8x128xi1>, vector<8x128xf32>
    %138 = vector.shape_cast %100 : vector<8x1xf32> to vector<8x1xf32>
    %139 = vector.broadcast %138 : vector<8x1xf32> to vector<8x128xf32>
    %140 = arith.select %126, %139, %137 : vector<8x128xi1>, vector<8x128xf32>
    %cst_37 = arith.constant dense<0.000000e+00> : vector<8x128xf32>
    %141 = tpu.matmul %113, %140, %cst_37 {dimension_numbers = #tpu.dot_dimension_numbers<[1], [0], [0], [1], [0, 0, 1, 1], [], []>} : vector<8x8xf32>, vector<8x128xf32>, vector<8x128xf32> -> vector<8x128xf32>
    %c7_i32 = arith.constant 7 : i32
    %142 = tpu.dynamic_rotate %141 by %c7_i32 dim 0 : vector<8x128xf32>, i32 -> vector<8x128xf32>
    %143 = vector.extract_strided_slice %141 {offsets = [0, 0], sizes = [8, 1], strides = [1, 1]} : vector<8x128xf32> to vector<8x1xf32>
    %144 = vector.extract_strided_slice %141 {offsets = [0, 1], sizes = [8, 1], strides = [1, 1]} : vector<8x128xf32> to vector<8x1xf32>
    %145 = vector.extract_strided_slice %141 {offsets = [0, 2], sizes = [8, 1], strides = [1, 1]} : vector<8x128xf32> to vector<8x1xf32>
    %146 = vector.extract_strided_slice %142 {offsets = [0, 0], sizes = [8, 1], strides = [1, 1]} : vector<8x128xf32> to vector<8x1xf32>
    %147 = vector.extract_strided_slice %142 {offsets = [0, 1], sizes = [8, 1], strides = [1, 1]} : vector<8x128xf32> to vector<8x1xf32>
    %148 = vector.extract_strided_slice %142 {offsets = [0, 2], sizes = [8, 1], strides = [1, 1]} : vector<8x128xf32> to vector<8x1xf32>
    %c7_i32_38 = arith.constant 7 : i32
    %149 = vector.broadcast %c7_i32_38 : i32 to vector<8x1xi32>
    %150 = arith.cmpi slt, %43, %149 : vector<8x1xi32>
    %151 = arith.extui %150 : vector<8x1xi1> to vector<8x1xi32>
    %152 = arith.sitofp %151 : vector<8x1xi32> to vector<8x1xf32>
    %153 = arith.subf %146, %143 : vector<8x1xf32>
    %cst_39 = arith.constant 5.000000e-01 : f32
    %154 = vector.broadcast %cst_39 : f32 to vector<8x1xf32>
    %155 = arith.mulf %154, %153 : vector<8x1xf32>
    %156 = arith.addf %144, %147 : vector<8x1xf32>
    %157 = arith.mulf %155, %156 : vector<8x1xf32>
    %158 = arith.mulf %157, %145 : vector<8x1xf32>
    %159 = arith.mulf %158, %148 : vector<8x1xf32>
    %160 = arith.mulf %159, %152 : vector<8x1xf32>
    %cst_40 = arith.constant dense<0.000000e+00> : vector<1xf32>
    %161 = vector.multi_reduction <add>, %160, %cst_40 [0] : vector<8x1xf32> to vector<1xf32>
    %162 = vector.shape_cast %161 : vector<1xf32> to vector<1x1xf32>
    %163 = vector.extract_strided_slice %2 {offsets = [0, 1], sizes = [1, 1], strides = [1, 1]} : vector<1x2xf32> to vector<1x1xf32>
    %cst_41 = arith.constant dense<0.000000e+00> : vector<1xf32>
    %164 = vector.multi_reduction <add>, %2, %cst_41 [1] : vector<1x2xf32> to vector<1xf32>
    %165 = vector.shape_cast %164 : vector<1xf32> to vector<1x1xf32>
    %166 = arith.mulf %162, %163 : vector<1x1xf32>
    %cst_42 = arith.constant 5.000000e-02 : f32
    %167 = vector.broadcast %cst_42 : f32 to vector<1x1xf32>
    %168 = arith.mulf %165, %167 : vector<1x1xf32>
    %169 = arith.divf %166, %168 : vector<1x1xf32>
    %cst_43 = arith.constant 0.000000e+00 : f32
    %cst_44 = arith.constant 1.000000e+00 : f32
    %170 = vector.broadcast %cst_43 : f32 to vector<1x1xf32>
    %171 = arith.maximumf %170, %169 : vector<1x1xf32>
    %172 = vector.broadcast %cst_44 : f32 to vector<1x1xf32>
    %173 = arith.minimumf %172, %171 : vector<1x1xf32>
    %174 = arith.mulf %173, %173 : vector<1x1xf32>
    %cst_45 = arith.constant 1.000000e+00 : f32
    %175 = vector.broadcast %cst_45 : f32 to vector<1x1xf32>
    %176 = arith.subf %175, %174 : vector<1x1xf32>
    %cst_46 = arith.constant 5.000000e-01 : f32
    %177 = vector.broadcast %cst_46 : f32 to vector<1x1xf32>
    %178 = arith.mulf %177, %34 : vector<1x1xf32>
    %cst_47 = arith.constant 5.000000e-01 : f32
    %179 = vector.broadcast %cst_47 : f32 to vector<1x1xf32>
    %180 = arith.mulf %179, %176 : vector<1x1xf32>
    %181 = arith.addf %178, %180 : vector<1x1xf32>
    %c0_48 = arith.constant 0 : index
    %c0_49 = arith.constant 0 : index
    %182 = vector.load %arg4[%c0_48, %c0_49] : memref<1x1xf32, #tpu.memory_space<vmem>>, vector<1x1xf32>
    tpu.vector_store %arg4[%c0_48, %c0_49], %181 {strides = array<i32>} : memref<1x1xf32, #tpu.memory_space<vmem>>, vector<1x1xf32>,
    return
  }
  func.func @transform_0(%arg0: i32) -> (i32, i32) {
    %c0_i32 = arith.constant 0 : i32
    %c0_i32_0 = arith.constant 0 : i32
    %c0_i32_1 = arith.constant 0 : i32
    return %c0_i32, %c0_i32_0 : i32, i32
  }
  func.func @transform_1(%arg0: i32) -> (i32, i32) {
    %c0_i32 = arith.constant 0 : i32
    %c0_i32_0 = arith.constant 0 : i32
    %c0_i32_1 = arith.constant 0 : i32
    return %c0_i32, %c0_i32_0 : i32, i32
  }
  func.func @transform_2(%arg0: i32) -> (i32, i32) {
    %c0_i32 = arith.constant 0 : i32
    %c0_i32_0 = arith.constant 0 : i32
    %c0_i32_1 = arith.constant 0 : i32
    return %c0_i32, %c0_i32_0 : i32, i32
  }
  func.func @transform_3(%arg0: i32) -> (i32, i32) {
    %c0_i32 = arith.constant 0 : i32
    %c0_i32_0 = arith.constant 0 : i32
    %c0_i32_1 = arith.constant 0 : i32
    return %c0_i32, %c0_i32_0 : i32, i32
  }
}

</mosaic_0001>

<llo_original>
// kernel: tpu_custom_call.1
$region0: #{tpu_custom_call.1}
  #allocation0 [shape = 'u32[]', space=smem, size = 0x4, offset = 0x4, fixed_abs, tag = 'smem constant byte address 0x4 - core index']
  #allocation1 [shape = 'u32[144,128]{1,0:T(1,128)}', space=vmem, size = 0x12000, scoped, tag = 'internal scratch']
  %s0 = inlined_call_operand.vmem [shape: f32[8,2], index: 0, kind: input, shape index: {}]
  %s1 = inlined_call_operand.vmem [shape: s32[8,1], index: 1, kind: input, shape index: {}]
  %s2 = inlined_call_operand.vmem [shape: f32[1,2], index: 2, kind: input, shape index: {}]
  %s3 = inlined_call_operand.hbm [shape: f32[1,1], index: 3, kind: output, shape index: {}]
  %s4 = sld [smem:[#allocation0]]
  $region22: #{tpu_custom_call.1} parent=0
    _
  %s6 = ssub.s32 1, %s4
  %s7 = scalar_select 0, %s6, %s4
  $region1: #{tpu_custom_call.1} parent=0
    #allocation2 [shape = 'u8[512]{0}', space=vmem, size = 0x400, scoped, tag = 'output window, operand 0, single buffered']
    #allocation3 [shape = 's32[1]{0}', space=sflag, size = 0x4, scoped, tag = 'scoped memory for tpu_custom_call.1']
    %8 = vsyncpa [#allocation3], 0
    // Predicated region
    $region2: #{tpu_custom_call.1} parent=1 // pred_check
      _
    $region3: #{tpu_custom_call.1} parent=1 // pred_check_branch
      %10 = sbr.rel (0) target = $region5
    $region4: #{tpu_custom_call.1} parent=1 // pred_region
      _
    $region5: #{tpu_custom_call.1} parent=1 // pred_fallthru
      _
    // Predicated region
    $region6: #{tpu_custom_call.1} parent=1 // pred_check
      _
    $region7: #{tpu_custom_call.1} parent=1 // pred_check_branch
      %12 = sbr.rel (0) target = $region9
    $region8: #{tpu_custom_call.1} parent=1 // pred_region
      _
    $region9: #{tpu_custom_call.1} parent=1 // pred_fallthru
      _
    // Predicated region
    $region10: #{tpu_custom_call.1} parent=1 // pred_check
      _
    $region11: #{tpu_custom_call.1} parent=1 // pred_check_branch
      %14 = sbr.rel (0) target = $region13
    $region12: #{tpu_custom_call.1} parent=1 // pred_region
      _
    $region13: #{tpu_custom_call.1} parent=1 // pred_fallthru
      _
    %v16 = vld [vmem:[%s0] sm:$0xff]
    %v17 = vld [vmem:[%s1] sm:$0xff]
    %v18 = vld [vmem:[%s2] sm:$0x1]
    %v19 = vlaneseq
    %v20 = vand.u32 %v19, 127
    %21 = vset.pattern.permute.xlu0 0
    %22 = vperm.xlu0 %21, %v17
    %v23 = vpop.permute.xlu0 %22
    %vm24 = vcmp.eq.s32.totalorder %v23, %v20
    %v25 = vsel %vm24, 1, 0
    %v26 = vcvt.s32.f32 %v25
    %v27 = vmul.f32 %v26, 0.9
    %v28 = vadd.f32 %v27, 0.05
    %vm29 = vcmask 15360
    %v30 = vsel %vm29, %v16, -inf
    %31 = vmax.xlane.f32.xlu0 %v30
    %v32 = vpop.xlane.xlu0 %31
    %v33 = vsub.f32 %v16, %v32
    %v34 = vmul.f32 %v33, 1.442695
    %v35 = vpow.pop %v34
    %v36 = vsel %vm29, %v35, 0.0
    %37 = vadd.xlane.f32.xlu0 %v36
    %v38 = vpop.xlane.xlu0 %37
    %v39 = vlog2.pop %v38
    %v40 = vmul.f32 %v39, 0.6931472
    %v41 = vsub.f32 %v33, %v40
    %v42 = vrcp.pop %v38
    %v43 = vmul.f32 %v35, %v42
    %v44 = vmul.f32 %v28, %v41
    %v46 = vlaneseq
    %v47 = vshrl.u32 %v46, 7
    %v48 = vsub.s32 0, %v47
    %v49 = vrot.slane %v18, %v48
    %v51 = vmul.f32 %v44, %v49
    %v52 = vsel %vm29, %v51, 0.0
    %53 = vadd.xlane.f32.xlu0 %v52
    %v54 = vpop.xlane.xlu0 %53
    %v55 = vsub.f32 0.0, %v54
    %v56 = vrot.slane %v55, 4
    %v57 = vadd.f32 %v55, %v56
    %v58 = vrot.slane %v57, 2
    %v59 = vadd.f32 %v57, %v58
    %v60 = vrot.slane %v59, 1
    %v61 = vadd.f32 %v59, %v60
    %v62 = vmul.f32 %v61, 0.125
    %vm63 = vcmp.eq.s32.totalorder %v17, 1
    %v64 = vsel %vm63, 1, 0
    %v65 = vcvt.s32.f32 %v64
    %v66 = vlaneseq
    %v67 = vshrl.u32 %v66, 7
    %vm68 = vcmp.eq.s32.totalorder %v67, %v20
    %70 = vset.pattern.permute.xlu0 1
    %71 = vperm.xlu0 %70, %v43
    %v72 = vpop.permute.xlu0 %71
    %v74 = vsel %vm68, %v72, 0.0
    %vm75 = vcmask 64512
    %v76 = vsel %vm75, %v74, 0.0
    %v77 = vrot.slane %v76, 4
    %v78 = vadd.f32 %v76, %v77
    %v79 = vrot.slane %v78, 2
    %v80 = vadd.f32 %v78, %v79
    %v81 = vrot.slane %v80, 1
    %v82 = vadd.f32 %v80, %v81
    %vm83 = vcmp.ge.f32.partialorder %v82, %v72
    %vm84 = vcmp.eq.f32.partialorder %v82, %v72
    %vm85 = vcmp.eq.s32.totalorder %v20, 0
    %vm86 = vcmp.eq.s32.totalorder %v20, 1
    %v87 = vsub.f32 1.0, %v65
    %89 = vset.pattern.permute.xlu0 0
    %90 = vperm.xlu0 %89, %v87
    %v91 = vpop.permute.xlu0 %90
    %v93 = vsel %vm86, %v91, 0.0
    %95 = vset.pattern.permute.xlu0 0
    %96 = vperm.xlu0 %95, %v65
    %v97 = vpop.permute.xlu0 %96
    %v99 = vsel %vm85, %v97, %v93
    %v100 = vsel %vm83, 1, 0
    %v101 = vcvt.s32.f32 %v100
    %v102 = vpack.c.bf16 %v101, %v101
    %v103 = vpack.c.bf16 %v99, %v99
    %v105 = vsel %vm75, %v102, 0
    %vm107 = vcmask 1043456
    %v109 = vsel %vm107, %v103, 0
    %111 = vmatprep.subr.bf16.mxu0 0
    %112 = vmatpush1.bf16.msra.mxu0 %v109
    %113 = vmatprep.subr.bf16.mxu0 0
    %114 = vmatpush1.bf16.msra.mxu0 0
    %115 = vmatprep.subr.bf16.mxu0 0
    %116 = vmatpush1.bf16.msra.mxu0 0
    %117 = vmatprep.subr.bf16.mxu0 0
    %118 = vmatpush1.bf16.msra.mxu0 0
    %119 = vmatprep.subr.bf16.mxu0 0
    %120 = vmatpush1.bf16.msra.mxu0 0
    %121 = vmatprep.subr.bf16.mxu0 0
    %122 = vmatpush1.bf16.msra.mxu0 0
    %123 = vmatprep.subr.bf16.mxu0 0
    %124 = vmatpush1.bf16.msra.mxu0 0
    %125 = vmatprep.subr.bf16.mxu0 0
    %126 = vmatpush1.bf16.msra.mxu0 0
    %127 = vmatprep.subr.bf16.mxu0 0
    %128 = vmatpush1.bf16.msra.mxu0 0
    %129 = vmatprep.subr.bf16.mxu0 0
    %130 = vmatpush1.bf16.msra.mxu0 0
    %131 = vmatprep.subr.bf16.mxu0 0
    %132 = vmatpush1.bf16.msra.mxu0 0
    %133 = vmatprep.subr.bf16.mxu0 0
    %134 = vmatpush1.bf16.msra.mxu0 0
    %135 = vmatprep.subr.bf16.mxu0 0
    %136 = vmatpush1.bf16.msra.mxu0 0
    %137 = vmatprep.subr.bf16.mxu0 0
    %138 = vmatpush1.bf16.msra.mxu0 0
    %139 = vmatprep.subr.bf16.mxu0 0
    %140 = vmatpush1.bf16.msra.mxu0 0
    %141 = vmatprep.subr.bf16.mxu0 0
    %142 = vmatpush1.bf16.msra.mxu0 0
    %143 = vmatprep.mubr.bf16.mxu0 0
    %144 = vmatmul.mubr.bf16.gmra.mrb[0].mxu0 %v105
    %v145 = vpop.f32.mrb[0].mxu0
    %v146 = vadd.f32 0.0, %v145
    %v147 = vpop.f32.mrb[0].mxu0
    %v148 = vpop.f32.mrb[0].mxu0
    %v149 = vpop.f32.mrb[0].mxu0
    %150 = vdwg.mxu0
    %vm151 = vcmask 7168
    %v152 = vsel %vm151, %v65, 0.0
    %v153 = vrot.slane %v152, 4
    %v154 = vadd.f32 %v152, %v153
    %v155 = vrot.slane %v154, 2
    %v156 = vadd.f32 %v154, %v155
    %v157 = vrot.slane %v156, 1
    %v158 = vadd.f32 %v156, %v157
    %v159 = vsub.f32 8.0, %v158
    %vm160 = vcmp.gt.f32.partialorder %v158, 0.0
    %v161 = vmax.f32 %v158, 1.0
    %v162 = vrcp.pop %v161
    %v163 = vmul.f32 1.0, %v162
    %v164 = vsel %vm160, %v163, 0.0
    %vm165 = vcmp.gt.f32.partialorder %v159, 0.0
    %v166 = vmax.f32 %v159, 1.0
    %v167 = vrcp.pop %v166
    %v168 = vmul.f32 1.0, %v167
    %v169 = vsel %vm165, %v168, 0.0
    %v170 = vmul.f32 %v146, %v164
    %172 = vrot.lane.b32.xlu0 %v169, 1
    %v173 = vpop.permute.xlu0 %172
    %v175 = vmul.f32 %v146, %v173
    %vm176 = vmxor %vm83, 1
    %vm177 = vcmp.lt.s32.totalorder %v67, %v20
    %vm178 = vmand %vm84, %vm177
    %vm179 = vmor %vm176, %vm178
    %v180 = vsel %vm179, 1, 0
    %v181 = vcvt.s32.f32 %v180
    %v182 = vsel %vm75, %v181, 0.0
    %v183 = vrot.slane %v182, 4
    %v184 = vadd.f32 %v182, %v183
    %v185 = vrot.slane %v184, 2
    %v186 = vadd.f32 %v184, %v185
    %v187 = vrot.slane %v186, 1
    %v188 = vadd.f32 %v186, %v187
    %v189 = vcvt.s32.f32 %v67
    %vm190 = vcmp.eq.f32.partialorder %v189, %v188
    %v191 = vsel %vm190, 1, 0
    %v192 = vcvt.s32.f32 %v191
    %v193 = vsub.f32 %v170, 0.95
    %v194 = vmax.f32 %v193, 0.0
    %vm195 = vcmp.ge.f32.partialorder %v170, 0.95
    %vm196 = vcmp.le.f32.partialorder %v170, 1.0
    %vm197 = vmand %vm195, %vm196
    %v198 = vsel %vm197, 1, 0
    %v199 = vcvt.s32.f32 %v198
    %vm200 = vcmp.eq.s32.totalorder %v20, 2
    %202 = vset.pattern.permute.xlu0 0
    %203 = vperm.xlu0 %202, %v199
    %v204 = vpop.permute.xlu0 %203
    %v206 = vsel %vm200, %v204, 0.0
    %208 = vset.pattern.permute.xlu0 0
    %209 = vperm.xlu0 %208, %v194
    %v210 = vpop.permute.xlu0 %209
    %v212 = vsel %vm86, %v210, %v206
    %214 = vset.pattern.permute.xlu0 1
    %215 = vperm.xlu0 %214, %v175
    %v216 = vpop.permute.xlu0 %215
    %v218 = vsel %vm85, %v216, %v212
    %v220 = vsel %vm75, %v192, 0
    %222 = vmatprep.subr.mxu0 0.0
    %223 = vmatpush1.msra.mxu0 %v218
    %224 = vmatprep.subr.mxu0 0.0
    %225 = vmatpush1.msra.mxu0 0.0
    %226 = vmatprep.subr.mxu0 0.0
    %227 = vmatpush1.msra.mxu0 0.0
    %228 = vmatprep.subr.mxu0 0.0
    %229 = vmatpush1.msra.mxu0 0.0
    %230 = vmatprep.subr.mxu0 0.0
    %231 = vmatpush1.msra.mxu0 0.0
    %232 = vmatprep.subr.mxu0 0.0
    %233 = vmatpush1.msra.mxu0 0.0
    %234 = vmatprep.subr.mxu0 0.0
    %235 = vmatpush1.msra.mxu0 0.0
    %236 = vmatprep.subr.mxu0 0.0
    %237 = vmatpush1.msra.mxu0 0.0
    %238 = vmatprep.subr.mxu0 0.0
    %239 = vmatpush1.msra.mxu0 0.0
    %240 = vmatprep.subr.mxu0 0.0
    %241 = vmatpush1.msra.mxu0 0.0
    %242 = vmatprep.subr.mxu0 0.0
    %243 = vmatpush1.msra.mxu0 0.0
    %244 = vmatprep.subr.mxu0 0.0
    %245 = vmatpush1.msra.mxu0 0.0
    %246 = vmatprep.subr.mxu0 0.0
    %247 = vmatpush1.msra.mxu0 0.0
    %248 = vmatprep.subr.mxu0 0.0
    %249 = vmatpush1.msra.mxu0 0.0
    %250 = vmatprep.subr.mxu0 0.0
    %251 = vmatpush1.msra.mxu0 0.0
    %252 = vmatprep.subr.mxu0 0.0
    %253 = vmatpush1.msra.mxu0 0.0
    %254 = vmatprep.subr.mxu0 0.0
    %255 = vmatpush1.msra.mxu0 0.0
    %256 = vmatprep.subr.mxu0 0.0
    %257 = vmatpush1.msra.mxu0 0.0
    %258 = vmatprep.subr.mxu0 0.0
    %259 = vmatpush1.msra.mxu0 0.0
    %260 = vmatprep.subr.mxu0 0.0
    %261 = vmatpush1.msra.mxu0 0.0
    %262 = vmatprep.subr.mxu0 0.0
    %263 = vmatpush1.msra.mxu0 0.0
    %264 = vmatprep.subr.mxu0 0.0
    %265 = vmatpush1.msra.mxu0 0.0
    %266 = vmatprep.subr.mxu0 0.0
    %267 = vmatpush1.msra.mxu0 0.0
    %268 = vmatprep.subr.mxu0 0.0
    %269 = vmatpush1.msra.mxu0 0.0
    %270 = vmatprep.subr.mxu0 0.0
    %271 = vmatpush1.msra.mxu0 0.0
    %272 = vmatprep.subr.mxu0 0.0
    %273 = vmatpush1.msra.mxu0 0.0
    %274 = vmatprep.subr.mxu0 0.0
    %275 = vmatpush1.msra.mxu0 0.0
    %276 = vmatprep.subr.mxu0 0.0
    %277 = vmatpush1.msra.mxu0 0.0
    %278 = vmatprep.subr.mxu0 0.0
    %279 = vmatpush1.msra.mxu0 0.0
    %280 = vmatprep.subr.mxu0 0.0
    %281 = vmatpush1.msra.mxu0 0.0
    %282 = vmatprep.subr.mxu0 0.0
    %283 = vmatpush1.msra.mxu0 0.0
    %284 = vmatprep.subr.mxu0 0.0
    %285 = vmatpush1.msra.mxu0 0.0
    %286 = vmatprep.mubr.f32.mxu0 0.0
    %287 = vmatmul.mubr.f32.gmra.mrb[0].mxu0 %v220
    %v288 = vpop.f32.mrb[0].mxu0
    %v289 = vadd.f32 0.0, %v288
    %v290 = vpop.f32.mrb[0].mxu0
    %291 = vdwg.mxu0
    %v292 = vrot.slane %v289, 1
    %vm293 = vcmp.lt.s32.totalorder %v67, 7
    %v294 = vsel %vm293, 1, 0
    %v295 = vcvt.s32.f32 %v294
    %v296 = vsub.f32 %v292, %v289
    %v297 = vmul.f32 %v296, 0.5
    %v298 = vadd.f32 %v289, %v292
    %300 = vrot.lane.b32.xlu0 %v298, 127
    %v301 = vpop.permute.xlu0 %300
    %v303 = vmul.f32 %v297, %v301
    %305 = vrot.lane.b32.xlu0 %v289, 126
    %v306 = vpop.permute.xlu0 %305
    %v308 = vmul.f32 %v303, %v306
    %310 = vrot.lane.b32.xlu0 %v292, 126
    %v311 = vpop.permute.xlu0 %310
    %v313 = vmul.f32 %v308, %v311
    %v314 = vmul.f32 %v313, %v295
    %v315 = vsel %vm151, %v314, 0.0
    %v316 = vrot.slane %v315, 4
    %v317 = vadd.f32 %v315, %v316
    %v318 = vrot.slane %v317, 2
    %v319 = vadd.f32 %v317, %v318
    %v320 = vrot.slane %v319, 1
    %v321 = vadd.f32 %v319, %v320
    %vm322 = vcmask 8192
    %v323 = vsel %vm322, %v18, 0.0
    %324 = vadd.xlane.f32.xlu0 %v323
    %v325 = vpop.xlane.xlu0 %324
    %326 = vrot.lane.b32.xlu0 %v49, 127
    %v327 = vpop.permute.xlu0 %326
    %v329 = vmul.f32 %v321, %v327
    %v330 = vmul.f32 %v325, 0.05
    %v331 = vrcp.pop %v330
    %v332 = vmul.f32 %v329, %v331
    %v333 = vmax.f32 %v332, 0.0
    %v334 = vmin.f32 %v333, 1.0
    %v335 = vmul.f32 %v334, %v334
    %v336 = vsub.f32 1.0, %v335
    %v337 = vmul.f32 %v62, 0.5
    %v338 = vmul.f32 %v336, 0.5
    %v339 = vadd.f32 %v337, %v338
    %vm340 = vcmask 0
    %341 = vst.msk [vmem:[#allocation2] sm:$0x1] %vm340, %v339
    // Predicated region
    $region14: #{tpu_custom_call.1} parent=1 // pred_check
      _
    $region15: #{tpu_custom_call.1} parent=1 // pred_check_branch
      %343 = sbr.rel (0) target = $region17
    $region16: #{tpu_custom_call.1} parent=1 // pred_region
      %s345 = ssub.s32 16, 16
      %346 = vsyncadd [#allocation3], %s345
      %s348 = sshll.u32 [#allocation2], 4
      %s349 = int_to_ptr.vmem [resolvable:$true] %s348
      %351 = dma.vmem_to_hbm [thread:$0]  %s349, 16, %s3, [#allocation3]
    $region17: #{tpu_custom_call.1} parent=1 // pred_fallthru
      _
    // Predicated region
    $region18: #{tpu_custom_call.1} parent=1 // pred_check
      _
    $region19: #{tpu_custom_call.1} parent=1 // pred_check_branch
      %353 = sbr.rel (0) target = $region21
    $region20: #{tpu_custom_call.1} parent=1 // pred_region
      %354 = dma.done [#allocation3], 16
    $region21: #{tpu_custom_call.1} parent=1 // pred_fallthru
      _
    %355 = vsyncpa [#allocation3], 1

</llo_original>
